<compile_context>
chip_gen: v6e
topology: v6e:2x2x1
jax: 0.10.0
libtpu: 0.0.40
codegen_flags: <defaults>
</compile_context>

<pallas_src>
import math

import jax
import jax.numpy as jnp
from jax.experimental import pallas as pl
from jax.experimental.pallas import tpu as pltpu


def _round_up(x: int, m: int) -> int:
    return ((x + m - 1) // m) * m


def _round_down(x: int, m: int) -> int:
    return (x // m) * m


def _largest_aligned_divisor(n: int, align: int, cap: int) -> int:
    """Largest d with d | n, d % align == 0, d <= cap (0 if none exists)."""
    best = 0
    limit = min(n, cap)
    for d in range(align, limit + 1, align):
        if n % d == 0:
            best = d
    return best


def _smallest_aligned_divisor_ge(n: int, align: int, lo: int) -> int:
    """Smallest d >= lo with d | n and d % align == 0, else n itself."""
    d0 = _round_up(lo, align)
    for d in range(d0, n, align):
        if n % d == 0:
            return d
    return n


def _make_conv1d_kernel(temporal_width: int, tile_s: int, halo: int,
                        needs_carry: bool):
    def conv1d_kernel(x_ref, w_ref, b_ref, o_ref, xh_ref):
        # x_ref, o_ref : (tile_s, tile_w)   current seq tile (batch squeezed)
        # w_ref        : (temporal_width, tile_w)
        # b_ref        : (1, tile_w)
        # xh_ref       : (halo + tile_s, tile_w) persistent VMEM scratch in the
        #                INPUT dtype:
        #                  rows [0 : halo)            causal history (prev tail)
        #                  rows [halo : halo+tile_s)  current tile (staged below)
        seq_idx = pl.program_id(2)

        if temporal_width > 1:
            # First seq tile of every (batch, width-tile): causal history is 0.
            @pl.when(seq_idx == 0)
            def _():
                xh_ref[0:halo, :] = jnp.zeros((halo, xh_ref.shape[1]),
                                              xh_ref.dtype)

        x = x_ref[...]                               # (tile_s, tile_w), input dtype
        w = w_ref[...].astype(jnp.float32)           # (T, tile_w) — hoisted
        bias = b_ref[...].astype(jnp.float32)        # (1, tile_w)

        # shift == 0 tap + bias straight from the freshly loaded tile.
        acc = x.astype(jnp.float32) * w[temporal_width - 1][None, :] + bias

        if temporal_width > 1:
            # Stage the current tile next to its history with ONE aligned
            # static store (input dtype — half the bytes for bf16).  Each tap
            # is then a plain Ref slice read; no concatenated f32 slab ever
            # materializes in VMEM, so spill/vst traffic is minimal.
            xh_ref[halo:halo + tile_s, :] = x
            for shift in range(1, temporal_width):   # small static unrolled loop
                lo = halo - shift
                window = xh_ref[lo:lo + tile_s, :].astype(jnp.float32)
                acc = acc + window * w[temporal_width - 1 - shift][None, :]

            if needs_carry:
                # Tail of the current tile becomes the next seq tile's history.
                # Source [tile_s, tile_s+halo) and dest [0, halo) are disjoint
                # because the wrapper enforces tile_s >= halo.
                xh_ref[0:halo, :] = xh_ref[tile_s:tile_s + halo, :]

        o_ref[...] = acc.astype(o_ref.dtype)

    return conv1d_kernel


def conv1d_forward(x, w, b, temporal_width: int, *, tile_s=None, tile_w=None):
    """x: (B, S, W); w: (temporal_width, W); b: (W,). Returns (conv_out, None)."""
    B, S, W = x.shape
    assert w.shape == (temporal_width, W)
    assert b.shape == (W,)

    itemsize = jnp.dtype(x.dtype).itemsize
    # History rows carried across seq tiles; aligned so the staging store into
    # xh_ref starts on a full vreg-row boundary (f32: 8, bf16: 16, int8: 32).
    row_align = 8 * max(1, 4 // itemsize)
    halo = _round_up(max(temporal_width - 1, 1), row_align)

    # ---------------- width (lane) tiling: avoid HBM padding passes ---------
    MAX_FULL_W = 2048                 # full-width (pad-free) blocks up to this
    cap_w = 512
    if tile_w is not None:
        assert W % tile_w == 0 and (tile_w % 128 == 0 or tile_w == W), \
            "tile_w must divide W and be lane-aligned (or equal the full width)"
        W_pad = W
    elif W % 128 == 0:
        # v7x: the seq axis is serialized by the carry, so batch*width must
        # provide >= 2 parallel units for the two TensorCores — but only split
        # the width if the resulting strided-DMA rows stay >= ~1 KiB.
        min_split_w = max(128, 1024 // itemsize)
        if B == 1 and W // 2 >= min_split_w:
            cap_w = min(cap_w, W // 2)
        tile_w = _largest_aligned_divisor(W, 128, cap_w) or W
        W_pad = W
    elif W <= MAX_FULL_W:
        # Ragged but small width: one full-width block (legal: block == full
        # dim, contiguous DMA) — no jnp.pad / output-slice HBM passes.
        tile_w = W
        W_pad = W
    else:
        # Large ragged width: minimal pad to the next 128-lane multiple only.
        W_pad = _round_up(W, 128)
        tile_w = _largest_aligned_divisor(W_pad, 128, cap_w)
    n_wt = W_pad // tile_w

    # ---------------- seq (sublane) tiling ----------------------------------
    # ~2 MiB blocks: 3x-in + 2x-out + history scratch stays ~12 MiB — far under
    # v7x's 64 MiB VMEM while large enough for the HBM roofline on v5e/v6e.
    max_block_elems = (2 * 1024 * 1024) // itemsize
    cap_s = min(1024, max(8, _round_down(max_block_elems // tile_w, 8)))
    if tile_s is not None:
        assert S % tile_s == 0 and (tile_s % 8 == 0 or tile_s == S), \
            "tile_s must divide S and be sublane-aligned (or equal the full seq)"
        S_pad = S
    elif S % 8 == 0:
        tile_s = _largest_aligned_divisor(S, 8, cap_s)
        if tile_s < halo:
            tile_s = _smallest_aligned_divisor_ge(S, 8, halo)
        S_pad = S
    elif S * tile_w <= 2 * max_block_elems:
        tile_s = S                     # single pad-free full-seq block
        S_pad = S
    else:
        # Large ragged seq: minimal pad to the next multiple of 8 only.
        S_pad = _round_up(S, 8)
        tile_s = _largest_aligned_divisor(S_pad, 8, cap_s)
        if tile_s < halo:
            tile_s = _smallest_aligned_divisor_ge(S_pad, 8, halo)
    n_st = S_pad // tile_s

    needs_carry = n_st > 1 and temporal_width > 1
    if needs_carry:
        # Carry copies rows [tile_s, tile_s+halo) -> [0, halo): must not overlap.
        assert tile_s >= halo, "seq tile must be at least `halo` rows"

    # ---------------- minimal padding (rare path) ----------------------------
    xp = x
    if S_pad != S or W_pad != W:
        xp = jnp.pad(x, ((0, 0), (0, S_pad - S), (0, W_pad - W)))
    wp = w if W_pad == W else jnp.pad(w, ((0, 0), (0, W_pad - W)))
    bp = (b if W_pad == W else jnp.pad(b, (0, W_pad - W))).reshape(1, W_pad)

    # ---------------- VMEM budget & cost hint --------------------------------
    blk_bytes = tile_s * tile_w * itemsize
    xh_bytes = (halo + tile_s) * tile_w * itemsize
    est_vmem = (3 + 2) * blk_bytes + xh_bytes \
        + 2 * (temporal_width + 1) * tile_w * itemsize
    vmem_limit = int(min(64 * 1024 * 1024, max(32 * 1024 * 1024, 2 * est_vmem)))

    cost = pl.CostEstimate(
        flops=2 * temporal_width * B * S_pad * W_pad,
        transcendentals=0,
        bytes_accessed=2 * B * S_pad * W_pad * itemsize
        + (temporal_width + 1) * W_pad * itemsize,
    )

    kernel = _make_conv1d_kernel(temporal_width, tile_s, halo, needs_carry)
    x_idx = lambda bi, wi, si: (bi, si, wi)

    def _run(deep_x_pipeline: bool):
        if deep_x_pipeline:
            # Compute per step is tiny and the seq axis is serialized by the
            # carry; a 3rd input buffer smooths strided-DMA jitter.
            x_spec = pl.BlockSpec((None, tile_s, tile_w), x_idx,
                                  pipeline_mode=pl.Buffered(3))
        else:
            x_spec = pl.BlockSpec((None, tile_s, tile_w), x_idx)
        return pl.pallas_call(
            kernel,
            out_shape=jax.ShapeDtypeStruct((B, S_pad, W_pad), x.dtype),
            grid_spec=pltpu.PrefetchScalarGridSpec(
                num_scalar_prefetch=0,
                # seq axis LAST (innermost) so the carry flows tile si -> si+1.
                grid=(B, n_wt, n_st),
                in_specs=[
                    x_spec,
                    pl.BlockSpec((temporal_width, tile_w),
                                 lambda bi, wi, si: (0, wi)),
                    pl.BlockSpec((1, tile_w),
                                 lambda bi, wi, si: (0, wi)),
                ],
                out_specs=pl.BlockSpec((None, tile_s, tile_w), x_idx),
                scratch_shapes=[pltpu.VMEM((halo + tile_s, tile_w), x.dtype)],
            ),
            compiler_params=pltpu.CompilerParams(
                dimension_semantics=("parallel", "parallel", "arbitrary"),
                vmem_limit_bytes=vmem_limit,
            ),
            cost_estimate=cost,
        )(xp, wp, bp)

    try:
        out = _run(True)
    except Exception:
        # Fallback for jax builds without BlockSpec.pipeline_mode / pl.Buffered:
        # default double-buffering is only a few percent slower here.
        out = _run(False)

    if S_pad != S or W_pad != W:
        out = out[:, :S, :W]
    return out, None


def conv1d_reference(x, w, b, temporal_width: int):
    """Pure-JAX reference mirroring the PyTorch forward loop exactly."""
    B, S, W = x.shape
    conv_out = jnp.zeros_like(x)
    for shift in range(temporal_width):
        end_idx = S - shift
        if end_idx <= 0:
            continue
        x_window = x[:, :end_idx]
        pad_len = S - x_window.shape[1]
        x_window_padded = jnp.concatenate(
            [jnp.zeros((B, pad_len, W), dtype=x.dtype), x_window], axis=1
        )
        conv_out = conv_out + x_window_padded * w[temporal_width - shift - 1][None, None, :]
    return conv_out + b[None, None, :]


if __name__ == "__main__":
    # Small shapes consistent with the module's forward: (batch, seq_len, width).
    batch, seq_len, width = 2, 48, 256
    temporal_width = 4
    w_init_variance_scale = 0.01

    key = jax.random.PRNGKey(0)
    kx, kw, kb = jax.random.split(key, 3)

    x = jax.random.normal(kx, (batch, seq_len, width), dtype=jnp.float32)

    # reset_parameters(): w ~ N(0, sqrt(variance_scale / T)); bias is zero in
    # the module, but we use a small nonzero bias to exercise the bias path.
    std = math.sqrt(w_init_variance_scale / temporal_width)
    w = std * jax.random.normal(kw, (temporal_width, width), dtype=jnp.float32)
    b = 0.1 * jax.random.normal(kb, (width,), dtype=jnp.float32)

    ref = conv1d_reference(x, w, b, temporal_width)

    # 1) Default tiling: S and W are already aligned -> zero padding, zero
    #    extra HBM passes (single seq tile, single width tile per batch).
    out, none_out = conv1d_forward(x, w, b, temporal_width)
    out = jax.block_until_ready(out)
    assert none_out is None
    assert out.shape == x.shape and out.dtype == x.dtype
    assert jnp.allclose(out, ref, atol=1e-5, rtol=1e-5), "default-tile mismatch"

    # 2) Forced small tiles: exercises the seq-halo carry (3 seq tiles) and
    #    the width-parallel axis (2 width tiles).
    out2, _ = conv1d_forward(x, w, b, temporal_width, tile_s=16, tile_w=128)
    out2 = jax.block_until_ready(out2)
    assert jnp.allclose(out2, ref, atol=1e-5, rtol=1e-5), "small-tile mismatch"

    # 3) Ragged, unaligned shape (B=1, S=11, W=96): exercises the pad-free
    #    full-dim block path.
    x3 = jax.random.normal(jax.random.PRNGKey(1), (1, 11, 96), dtype=jnp.float32)
    w3 = std * jax.random.normal(kw, (temporal_width, 96), dtype=jnp.float32)
    b3 = 0.1 * jax.random.normal(kb, (96,), dtype=jnp.float32)
    out3, _ = conv1d_forward(x3, w3, b3, temporal_width)
    out3 = jax.block_until_ready(out3)
    ref3 = conv1d_reference(x3, w3, b3, temporal_width)
    assert jnp.allclose(out3, ref3, atol=1e-5, rtol=1e-5), "ragged-shape mismatch"

    print("KERNEL_OK")
</pallas_src>

<mosaic_0001>
module attributes {stable_mosaic.version = 11 : i64} {
  func.func @conv1d_kernel(%arg0: i32, %arg1: i32, %arg2: i32, %arg3: memref<1x48x256xf32, #tpu.memory_space<vmem>>, %arg4: memref<4x256xf32, #tpu.memory_space<vmem>>, %arg5: memref<1x256xf32, #tpu.memory_space<vmem>>, %arg6: memref<1x48x256xf32, #tpu.memory_space<vmem>>, %arg7: memref<56x256xf32, #tpu.memory_space<vmem>>) attributes {dimension_semantics = [#tpu.dimension_semantics<parallel>, #tpu.dimension_semantics<parallel>, #tpu.dimension_semantics<arbitrary>], iteration_bounds = array<i64: 2, 1, 1>, scalar_prefetch = 0 : i64, scratch_operands = 1 : i64, tpu.core_type = #tpu.core_type<tc>, window_params = [{transform_indices = @transform_0, window_bounds = array<i64: 1, 48, 256>}, {transform_indices = @transform_1, window_bounds = array<i64: 4, 256>}, {transform_indices = @transform_2, window_bounds = array<i64: 1, 256>}, {transform_indices = @transform_3, window_bounds = array<i64: 1, 48, 256>}]} {
    %c0_i32 = arith.constant 0 : i32
    %0 = arith.cmpi eq, %arg2, %c0_i32 : i32
    %1 = arith.extui %0 : i1 to i32
    %c0_i32_0 = arith.constant 0 : i32
    %2 = arith.cmpi ne, %1, %c0_i32_0 : i32
    scf.if %2 {
      %cst = arith.constant 0.000000e+00 : f32
      %39 = vector.broadcast %cst : f32 to vector<8x256xf32>
      %c0_14 = arith.constant 0 : index
      %c0_15 = arith.constant 0 : index
      %40 = vector.load %arg7[%c0_14, %c0_15] : memref<56x256xf32, #tpu.memory_space<vmem>>, vector<8x256xf32>
      tpu.vector_store %arg7[%c0_14, %c0_15], %39 {strides = array<i32>} : memref<56x256xf32, #tpu.memory_space<vmem>>, vector<8x256xf32>,
    } else {
    }
    %c0 = arith.constant 0 : index
    %c0_1 = arith.constant 0 : index
    %c0_2 = arith.constant 0 : index
    %3 = vector.load %arg3[%c0, %c0_1, %c0_2] : memref<1x48x256xf32, #tpu.memory_space<vmem>>, vector<1x48x256xf32>
    %4 = vector.shape_cast %3 : vector<1x48x256xf32> to vector<48x256xf32>
    %c0_3 = arith.constant 0 : index
    %c0_4 = arith.constant 0 : index
    %5 = vector.load %arg4[%c0_3, %c0_4] : memref<4x256xf32, #tpu.memory_space<vmem>>, vector<4x256xf32>
    %c0_5 = arith.constant 0 : index
    %c0_6 = arith.constant 0 : index
    %6 = vector.load %arg5[%c0_5, %c0_6] : memref<1x256xf32, #tpu.memory_space<vmem>>, vector<1x256xf32>
    %7 = vector.extract_strided_slice %5 {offsets = [3, 0], sizes = [1, 256], strides = [1, 1]} : vector<4x256xf32> to vector<1x256xf32>
    %8 = vector.shape_cast %7 : vector<1x256xf32> to vector<256xf32>
    %9 = vector.shape_cast %8 : vector<256xf32> to vector<1x256xf32>
    %10 = vector.broadcast %9 : vector<1x256xf32> to vector<48x256xf32>
    %11 = arith.mulf %4, %10 : vector<48x256xf32>
    %12 = vector.broadcast %6 : vector<1x256xf32> to vector<48x256xf32>
    %13 = arith.addf %11, %12 : vector<48x256xf32>
    %c8 = arith.constant 8 : index
    %c0_7 = arith.constant 0 : index
    %14 = vector.load %arg7[%c8, %c0_7] : memref<56x256xf32, #tpu.memory_space<vmem>>, vector<48x256xf32>
    tpu.vector_store %arg7[%c8, %c0_7], %4 {strides = array<i32>} : memref<56x256xf32, #tpu.memory_space<vmem>>, vector<48x256xf32>,
    %c7 = arith.constant 7 : index
    %c0_8 = arith.constant 0 : index
    %15 = vector.load %arg7[%c7, %c0_8] : memref<56x256xf32, #tpu.memory_space<vmem>>, vector<48x256xf32>
    %16 = vector.extract_strided_slice %5 {offsets = [2, 0], sizes = [1, 256], strides = [1, 1]} : vector<4x256xf32> to vector<1x256xf32>
    %17 = vector.shape_cast %16 : vector<1x256xf32> to vector<256xf32>
    %18 = vector.shape_cast %17 : vector<256xf32> to vector<1x256xf32>
    %19 = vector.broadcast %18 : vector<1x256xf32> to vector<48x256xf32>
    %20 = arith.mulf %15, %19 : vector<48x256xf32>
    %21 = arith.addf %13, %20 : vector<48x256xf32>
    %c6 = arith.constant 6 : index
    %c0_9 = arith.constant 0 : index
    %22 = vector.load %arg7[%c6, %c0_9] : memref<56x256xf32, #tpu.memory_space<vmem>>, vector<48x256xf32>
    %23 = vector.extract_strided_slice %5 {offsets = [1, 0], sizes = [1, 256], strides = [1, 1]} : vector<4x256xf32> to vector<1x256xf32>
    %24 = vector.shape_cast %23 : vector<1x256xf32> to vector<256xf32>
    %25 = vector.shape_cast %24 : vector<256xf32> to vector<1x256xf32>
    %26 = vector.broadcast %25 : vector<1x256xf32> to vector<48x256xf32>
    %27 = arith.mulf %22, %26 : vector<48x256xf32>
    %28 = arith.addf %21, %27 : vector<48x256xf32>
    %c5 = arith.constant 5 : index
    %c0_10 = arith.constant 0 : index
    %29 = vector.load %arg7[%c5, %c0_10] : memref<56x256xf32, #tpu.memory_space<vmem>>, vector<48x256xf32>
    %30 = vector.extract_strided_slice %5 {offsets = [0, 0], sizes = [1, 256], strides = [1, 1]} : vector<4x256xf32> to vector<1x256xf32>
    %31 = vector.shape_cast %30 : vector<1x256xf32> to vector<256xf32>
    %32 = vector.shape_cast %31 : vector<256xf32> to vector<1x256xf32>
    %33 = vector.broadcast %32 : vector<1x256xf32> to vector<48x256xf32>
    %34 = arith.mulf %29, %33 : vector<48x256xf32>
    %35 = arith.addf %28, %34 : vector<48x256xf32>
    %c0_11 = arith.constant 0 : index
    %c0_12 = arith.constant 0 : index
    %c0_13 = arith.constant 0 : index
    %36 = vector.load %arg6[%c0_11, %c0_12, %c0_13] : memref<1x48x256xf32, #tpu.memory_space<vmem>>, vector<1x48x256xf32>
    %37 = vector.shape_cast %36 : vector<1x48x256xf32> to vector<48x256xf32>
    %38 = vector.shape_cast %35 : vector<48x256xf32> to vector<1x48x256xf32>
    tpu.vector_store %arg6[%c0_11, %c0_12, %c0_13], %38 {strides = array<i32>} : memref<1x48x256xf32, #tpu.memory_space<vmem>>, vector<1x48x256xf32>,
    return
  }
  func.func @transform_0(%arg0: i32, %arg1: i32, %arg2: i32) -> (i32, i32, i32) {
    %c0_i32 = arith.constant 0 : i32
    return %arg0, %arg2, %arg1 : i32, i32, i32
  }
  func.func @transform_1(%arg0: i32, %arg1: i32, %arg2: i32) -> (i32, i32) {
    %c0_i32 = arith.constant 0 : i32
    %c0_i32_0 = arith.constant 0 : i32
    return %c0_i32, %arg1 : i32, i32
  }
  func.func @transform_2(%arg0: i32, %arg1: i32, %arg2: i32) -> (i32, i32) {
    %c0_i32 = arith.constant 0 : i32
    %c0_i32_0 = arith.constant 0 : i32
    return %c0_i32, %arg1 : i32, i32
  }
  func.func @transform_3(%arg0: i32, %arg1: i32, %arg2: i32) -> (i32, i32, i32) {
    %c0_i32 = arith.constant 0 : i32
    return %arg0, %arg2, %arg1 : i32, i32, i32
  }
}

</mosaic_0001>

<llo_original>
// kernel: tpu_custom_call.1
$region0: #{tpu_custom_call.1}
  #allocation0 [shape = 'u32[]', space=smem, size = 0x4, offset = 0x4, fixed_abs, tag = 'smem constant byte address 0x4 - core index']
  #allocation1 [shape = 'u32[144,128]{1,0:T(1,128)}', space=vmem, size = 0x12000, scoped, tag = 'internal scratch']
  #allocation2 [shape = 'f32[56,256]{1,0:T(8,128)}', space=vmem, size = 0xe000, scoped, tag = 'scratch operand']
  %s0 = inlined_call_operand.hbm [shape: f32[2,48,256], index: 0, kind: input, shape index: {}]
  %s1 = inlined_call_operand.hbm [shape: f32[4,256], index: 1, kind: input, shape index: {}]
  %s2 = inlined_call_operand.vmem [shape: f32[1,256], index: 2, kind: input, shape index: {}]
  %s3 = inlined_call_operand.hbm [shape: f32[2,48,256], index: 3, kind: output, shape index: {}]
  %s4 = sld [smem:[#allocation0]]
  $region57: #{tpu_custom_call.1} parent=0
    _
  %s6 = ssub.s32 1, %s4
  %s7 = scalar_select 0, %s6, %s4
  $region1: #{tpu_custom_call.1} parent=0
    #allocation3 [shape = 'u8[98304]{0}', space=vmem, size = 0x18000, scoped, tag = 'input window, operand 0']
    #allocation4 [shape = 's32[2]{0}', space=sflag, size = 0x8, scoped, tag = 'scoped memory for tpu_custom_call.1']
    #allocation5 [shape = 's32[2]{0}', space=sflag, size = 0x8, scoped, tag = 'scoped memory for tpu_custom_call.1']
    #allocation6 [shape = 'u8[4096]{0}', space=vmem, size = 0x1000, scoped, tag = 'input window, operand 1, single buffered']
    #allocation7 [shape = 's32[1]{0}', space=sflag, size = 0x4, scoped, tag = 'scoped memory for tpu_custom_call.1']
    #allocation8 [shape = 'u8[98304]{0}', space=vmem, size = 0x18000, scoped, tag = 'output window, operand 0']
    %8 = vsyncpa [#allocation4], 0
    %s9 = scalar_lea.sflag [#allocation4], 1
    %10 = vsyncpa %s9, 0
    %11 = vsyncpa [#allocation7], 0
    %12 = vsyncpa [#allocation5], 0
    %s13 = scalar_lea.sflag [#allocation5], 1
    %14 = vsyncpa %s13, 0
    loop: start=0, step=1, limit=4
    $region2: #{tpu_custom_call.1} parent=1 // loop_pre_header
      _
    $region3: #{tpu_custom_call.1} parent=1 // loop_header
      %s16 = sphi 0, %s20
      %p17 = scmp.ge.s32.totalorder %s16, 4
      %s23 = sphi 0, %s42
      %s24 = sphi 0, %s38
      %s25 = sphi 0, %s34
      %s26 = sphi 0, %s23
      %s27 = sphi 0, %s24
      %s28 = sphi 0, %s25
      %s29 = sphi 0, %s26
      %s30 = sphi 0, %s27
      %s31 = sphi 0, %s28
      %s49 = sphi 0, %s51
      %s52 = sphi 0, %s49
      %s53 = sphi 0, %s52
      %s69 = sphi 0, %s53
      %s75 = sphi 0, %s77
      %s78 = sphi 0, %s75
      %s79 = sphi 0, %s78
      %s95 = sphi 0, %s79
      %s101 = sphi 0, %s103
      %s104 = sphi 0, %s101
      %s105 = sphi 0, %s104
      %s121 = sphi 0, %s105
      %s131 = sphi 0, %s133
      %s134 = sphi 0, %s131
      %s135 = sphi 0, %s134
      %s151 = sphi 0, %s135
    $region4: #{tpu_custom_call.1} parent=1 // loop_header_branch
      %19 = sbr.rel (%p17) target = $region8
    $region5: #{tpu_custom_call.1} parent=1 // loop_body
      %s21 = ssub.s32 %s16, 1
      %s22 = ssub.s32 %s16, 2
      %s32 = sadd.s32 1, %s25
      %p33 = scmp.ge.s32.totalorder %s32, 1
      %s34 = scalar_select %p33, 0, %s32
      %s35 = sadd.s32 1, %s24
      %s36 = scalar_select %p33, %s35, %s24
      %p37 = scmp.ge.s32.totalorder %s36, 1
      %s38 = scalar_select %p37, 0, %s36
      %s39 = sadd.s32 1, %s23
      %s40 = scalar_select %p37, %s39, %s23
      %p41 = scmp.ge.s32.totalorder %s40, 2
      %s42 = scalar_select %p41, 0, %s40
      %s43 = ssub.s32 %s23, %s42
      %s44 = ssub.s32 %s25, %s34
      %s45 = sor.u32 %s43, %s44
      %s46 = ssub.s32 %s24, %s38
      %s47 = sor.u32 %s45, %s46
      %p48 = scmp.eq.s32.totalorder %s47, 0
      %s50 = sadd.s32 %s49, 1
      %s51 = scalar_select %p48, %s49, %s50
      %p54 = pneg %p48
      %p55 = scmp.eq.s32.totalorder %s16, 1
      %p56 = por %p54, %p55
      %p57 = scmp.ne.s32.totalorder %s49, %s52
      %p58 = scmp.eq.s32.totalorder %s16, 0
      %p59 = por %p57, %p58
      %p60 = scmp.ne.s32.totalorder %s49, %s52
      %p61 = scmp.eq.s32.totalorder %s21, 1
      %p62 = por %p60, %p61
      %p63 = scmp.ne.s32.totalorder %s52, %s53
      %p64 = scmp.eq.s32.totalorder %s21, 0
      %p65 = por %p63, %p64
      %p66 = scmp.ne.s32.totalorder %s52, %s53
      %p67 = scmp.eq.s32.totalorder %s22, 1
      %p68 = por %p66, %p67
      %p70 = scmp.ne.s32.totalorder %s53, %s69
      %p71 = scmp.eq.s32.totalorder %s22, 0
      %p72 = por %p70, %p71
      %s73 = ssub.s32 %s24, %s38
      %p74 = scmp.eq.s32.totalorder %s73, 0
      %s76 = sadd.s32 %s75, 1
      %s77 = scalar_select %p74, %s75, %s76
      %p80 = pneg %p74
      %p81 = scmp.eq.s32.totalorder %s16, 1
      %p82 = por %p80, %p81
      %p83 = scmp.ne.s32.totalorder %s75, %s78
      %p84 = scmp.eq.s32.totalorder %s16, 0
      %p85 = por %p83, %p84
      %p86 = scmp.ne.s32.totalorder %s75, %s78
      %p87 = scmp.eq.s32.totalorder %s21, 1
      %p88 = por %p86, %p87
      %p89 = scmp.ne.s32.totalorder %s78, %s79
      %p90 = scmp.eq.s32.totalorder %s21, 0
      %p91 = por %p89, %p90
      %p92 = scmp.ne.s32.totalorder %s78, %s79
      %p93 = scmp.eq.s32.totalorder %s22, 1
      %p94 = por %p92, %p93
      %p96 = scmp.ne.s32.totalorder %s79, %s95
      %p97 = scmp.eq.s32.totalorder %s22, 0
      %p98 = por %p96, %p97
      %s99 = ssub.s32 %s24, %s38
      %p100 = scmp.eq.s32.totalorder %s99, 0
      %s102 = sadd.s32 %s101, 1
      %s103 = scalar_select %p100, %s101, %s102
      %p106 = pneg %p100
      %p107 = scmp.eq.s32.totalorder %s16, 1
      %p108 = por %p106, %p107
      %p109 = scmp.ne.s32.totalorder %s101, %s104
      %p110 = scmp.eq.s32.totalorder %s16, 0
      %p111 = por %p109, %p110
      %p112 = scmp.ne.s32.totalorder %s101, %s104
      %p113 = scmp.eq.s32.totalorder %s21, 1
      %p114 = por %p112, %p113
      %p115 = scmp.ne.s32.totalorder %s104, %s105
      %p116 = scmp.eq.s32.totalorder %s21, 0
      %p117 = por %p115, %p116
      %p118 = scmp.ne.s32.totalorder %s104, %s105
      %p119 = scmp.eq.s32.totalorder %s22, 1
      %p120 = por %p118, %p119
      %p122 = scmp.ne.s32.totalorder %s105, %s121
      %p123 = scmp.eq.s32.totalorder %s22, 0
      %p124 = por %p122, %p123
      %s125 = ssub.s32 %s23, %s42
      %s126 = ssub.s32 %s25, %s34
      %s127 = sor.u32 %s125, %s126
      %s128 = ssub.s32 %s24, %s38
      %s129 = sor.u32 %s127, %s128
      %p130 = scmp.eq.s32.totalorder %s129, 0
      %s132 = sadd.s32 %s131, 1
      %s133 = scalar_select %p130, %s131, %s132
      %p136 = pneg %p130
      %p137 = scmp.eq.s32.totalorder %s16, 1
      %p138 = por %p136, %p137
      %p139 = scmp.ne.s32.totalorder %s131, %s134
      %p140 = scmp.eq.s32.totalorder %s16, 0
      %p141 = por %p139, %p140
      %p142 = scmp.ne.s32.totalorder %s131, %s134
      %p143 = scmp.eq.s32.totalorder %s21, 1
      %p144 = por %p142, %p143
      %p145 = scmp.ne.s32.totalorder %s134, %s135
      %p146 = scmp.eq.s32.totalorder %s21, 0
      %p147 = por %p145, %p146
      %p148 = scmp.ne.s32.totalorder %s134, %s135
      %p149 = scmp.eq.s32.totalorder %s22, 1
      %p150 = por %p148, %p149
      %p152 = scmp.ne.s32.totalorder %s135, %s151
      %p153 = scmp.eq.s32.totalorder %s22, 0
      %p154 = por %p152, %p153
      %p155 = scmp.le.s32.totalorder 1, %s16
      %p156 = scmp.lt.s32.totalorder %s16, 3
      %p157 = pnand %p155, %p156
      %p158 = pneg %p157
      // Predicated region
      $region9: #{tpu_custom_call.1} parent=5 // pred_check
        _
      $region10: #{tpu_custom_call.1} parent=5 // pred_check_branch
        %160 = sbr.rel (%p157) target = $region12
      $region11: #{tpu_custom_call.1} parent=5 // pred_region
        %s161 = ssub.s32 %s16, 1
        // Predicated region
        $region13: #{tpu_custom_call.1} parent=11 // pred_check
          %p162 = pneg %p91
        $region14: #{tpu_custom_call.1} parent=11 // pred_check_branch
          %164 = sbr.rel (%p162) target = $region16
        $region15: #{tpu_custom_call.1} parent=11 // pred_region
          %s165 = smul.u32 2, %s27
          %s167 = ssub.s32 128, 128
          %168 = vsyncadd [#allocation7], %s167
          %s169 = smul.addr %s165, 64
          %s170 = scalar_lea.hbm %s1, %s169
          %s172 = sshll.u32 [#allocation6], 4
          %s173 = int_to_ptr.vmem [resolvable:$true] %s172
          %175 = dma.hbm_to_vmem [thread:$0]  %s170, 128, %s173, [#allocation7]
        $region16: #{tpu_custom_call.1} parent=11 // pred_fallthru
          _
        // Predicated region
        $region17: #{tpu_custom_call.1} parent=11 // pred_check
          %p176 = pneg %p117
        $region18: #{tpu_custom_call.1} parent=11 // pred_check_branch
          %178 = sbr.rel (%p176) target = $region20
        $region19: #{tpu_custom_call.1} parent=11 // pred_region
          %s179 = smul.u32 2, %s27
          %p180 = scmp.lt.s32.totalorder %s179, 1
          %s181 = scalar_select %p180, %s179, 1
          %s182 = scalar_lea.vmem %s2, %s181
          %s183 = smul.u32 2, %s27
        $region20: #{tpu_custom_call.1} parent=11 // pred_fallthru
          _
      $region12: #{tpu_custom_call.1} parent=5 // pred_fallthru
        _
      %p184 = scmp.lt.s32.totalorder %s16, 2
      // Predicated region
      $region21: #{tpu_custom_call.1} parent=5 // pred_check
        %p185 = pneg %p184
      $region22: #{tpu_custom_call.1} parent=5 // pred_check_branch
        %187 = sbr.rel (%p185) target = $region24
      $region23: #{tpu_custom_call.1} parent=5 // pred_region
        // Predicated region
        $region25: #{tpu_custom_call.1} parent=23 // pred_check
          %p188 = pneg %p59
        $region26: #{tpu_custom_call.1} parent=23 // pred_check_branch
          %190 = sbr.rel (%p188) target = $region28
        $region27: #{tpu_custom_call.1} parent=23 // pred_region
          %s191 = sand.u32 %s49, 1
          %s192 = scalar_lea.sflag [#allocation4], %s191
          %s193 = sand.u32 %s49, 1
          %s194 = smul.addr %s193, 96
          %s195 = scalar_lea.vmem [#allocation3], %s194
          %s196 = smul.u32 6, %s25
          %s197 = smul.u32 2, %s24
          %s199 = ssub.s32 1536, 1536
          %200 = vsyncadd %s192, %s199
          %s201 = smul.addr %s196, 2
          %s202 = sadd.s32 %s197, %s201
          %s203 = smul.addr %s23, 12
          %s204 = sadd.s32 %s202, %s203
          %s205 = smul.addr %s204, 128
          %s206 = scalar_lea.hbm %s0, %s205
          %s207 = sshll.u32 %s195, 4
          %s208 = int_to_ptr.vmem [resolvable:$true] %s207
          %213 = dma.hbm_to_vmem [thread:$0]  %s206, 1536, %s208, %s192, 256, 256, 16
        $region28: #{tpu_custom_call.1} parent=23 // pred_fallthru
          _
      $region24: #{tpu_custom_call.1} parent=5 // pred_fallthru
        _
      %p214 = scmp.le.s32.totalorder 1, %s16
      %p215 = scmp.lt.s32.totalorder %s16, 3
      %p216 = pnand %p214, %p215
      %p217 = pneg %p216
      // Predicated region
      $region29: #{tpu_custom_call.1} parent=5 // pred_check
        _
      $region30: #{tpu_custom_call.1} parent=5 // pred_check_branch
        %219 = sbr.rel (%p216) target = $region32
      $region31: #{tpu_custom_call.1} parent=5 // pred_region
        %s220 = ssub.s32 %s16, 1
        %s221 = sand.u32 %s52, 1
        %s222 = scalar_lea.sflag [#allocation4], %s221
        %s223 = sand.u32 %s52, 1
        %s224 = smul.addr %s223, 96
        %s225 = scalar_lea.vmem [#allocation3], %s224
        // Predicated region
        $region33: #{tpu_custom_call.1} parent=31 // pred_check
          %p226 = pneg %p65
        $region34: #{tpu_custom_call.1} parent=31 // pred_check_branch
          %228 = sbr.rel (%p226) target = $region36
        $region35: #{tpu_custom_call.1} parent=31 // pred_region
          %229 = dma.done %s222, 1536
        $region36: #{tpu_custom_call.1} parent=31 // pred_fallthru
          _
        // Predicated region
        $region37: #{tpu_custom_call.1} parent=31 // pred_check
          %p230 = pneg %p91
        $region38: #{tpu_custom_call.1} parent=31 // pred_check_branch
          %232 = sbr.rel (%p230) target = $region40
        $region39: #{tpu_custom_call.1} parent=31 // pred_region
          %233 = dma.done [#allocation7], 128
        $region40: #{tpu_custom_call.1} parent=31 // pred_fallthru
          _
        %s234 = sand.u32 %s52, 1
        %s235 = scalar_lea.sflag [#allocation4], %s234
        %s236 = sand.u32 %s52, 1
        %s237 = smul.addr %s236, 96
        %s238 = scalar_lea.vmem [#allocation3], %s237
        %p239 = pneg %p65
        %p240 = pneg %p62
        %p241 = pneg %p91
        %p242 = pneg %p88
        %s243 = smul.u32 2, %s27
        %p244 = scmp.lt.s32.totalorder %s243, 1
        %s245 = scalar_select %p244, %s243, 1
        %s246 = scalar_lea.vmem %s2, %s245
        %p247 = pneg %p117
        %p248 = pneg %p114
        %p249 = pneg %p147
        %p250 = pneg %p144
        %s251 = sand.u32 %s134, 1
        %s252 = scalar_lea.sflag [#allocation5], %s251
        %s253 = sand.u32 %s134, 1
        %s254 = smul.addr %s253, 96
        %s255 = scalar_lea.vmem [#allocation8], %s254
        %s256 = smul.u32 6, %s28
        %s257 = smul.u32 2, %s27
        %s258 = smul.u32 2, %s27
        %s259 = smul.u32 2, %s27
        %p260 = scmp.lt.s32.totalorder %s259, 1
        %s261 = scalar_select %p260, %s259, 1
        %s262 = scalar_lea.vmem %s2, %s261
        %s263 = smul.u32 2, %s27
        %s264 = smul.u32 6, %s28
        %s265 = smul.u32 2, %s27
        %p266 = scmp.eq.s32.totalorder %s28, 0
        // Predicated region
        $region41: #{tpu_custom_call.1} parent=31 // pred_check
          %p267 = pneg %p266
        $region42: #{tpu_custom_call.1} parent=31 // pred_check_branch
          %269 = sbr.rel (%p267) target = $region44
        $region43: #{tpu_custom_call.1} parent=31 // pred_region
          %270 = vst [vmem:[#allocation2] sm:$0xff] 0.0
          %271 = vst [vmem:[#allocation2 + $0x8] sm:$0xff] 0.0
        $region44: #{tpu_custom_call.1} parent=31 // pred_fallthru
          _
        %v272 = vld [vmem:[%s225] sm:$0xff]
        %v273 = vld [vmem:[%s225 + $0x8] sm:$0xff]
        %v274 = vld [vmem:[%s225 + $0x10] sm:$0xff]
        %v275 = vld [vmem:[%s225 + $0x18] sm:$0xff]
        %v276 = vld [vmem:[%s225 + $0x20] sm:$0xff]
        %v277 = vld [vmem:[%s225 + $0x28] sm:$0xff]
        %v278 = vld [vmem:[%s225 + $0x30] sm:$0xff]
        %v279 = vld [vmem:[%s225 + $0x38] sm:$0xff]
        %v280 = vld [vmem:[%s225 + $0x40] sm:$0xff]
        %v281 = vld [vmem:[%s225 + $0x48] sm:$0xff]
        %v282 = vld [vmem:[%s225 + $0x50] sm:$0xff]
        %v283 = vld [vmem:[%s225 + $0x58] sm:$0xff]
        %v284 = vld [vmem:[#allocation6] sm:$0xff]
        %v285 = vld [vmem:[%s262] sm:$0x3]
        %v287 = vlaneseq
        %v288 = vshrl.u32 %v287, 7
        %v289 = vsub.s32 3, %v288
        %v290 = vrot.slane %v284, %v289
        %v291 = vlaneseq
        %v292 = vshrl.u32 %v291, 7
        %v293 = vsub.s32 7, %v292
        %v294 = vrot.slane %v284, %v293
        %v297 = vlaneseq
        %v298 = vshrl.u32 %v297, 7
        %v299 = vsub.s32 3, %v298
        %v300 = vrot.slane %v290, %v299
        %v301 = vlaneseq
        %v302 = vshrl.u32 %v301, 7
        %v303 = vsub.s32 3, %v302
        %v304 = vrot.slane %v294, %v303
        %v305 = vmul.f32 %v272, %v300
        %v306 = vmul.f32 %v273, %v304
        %v307 = vmul.f32 %v274, %v300
        %v308 = vmul.f32 %v275, %v304
        %v309 = vmul.f32 %v276, %v300
        %v310 = vmul.f32 %v277, %v304
        %v311 = vmul.f32 %v278, %v300
        %v312 = vmul.f32 %v279, %v304
        %v313 = vmul.f32 %v280, %v300
        %v314 = vmul.f32 %v281, %v304
        %v315 = vmul.f32 %v282, %v300
        %v316 = vmul.f32 %v283, %v304
        %v318 = vlaneseq
        %v319 = vshrl.u32 %v318, 7
        %v320 = vsub.s32 0, %v319
        %v321 = vrot.slane %v285, %v320
        %v322 = vlaneseq
        %v323 = vshrl.u32 %v322, 7
        %v324 = vsub.s32 1, %v323
        %v325 = vrot.slane %v285, %v324
        %v328 = vadd.f32 %v305, %v321
        %v329 = vadd.f32 %v306, %v325
        %v330 = vadd.f32 %v307, %v321
        %v331 = vadd.f32 %v308, %v325
        %v332 = vadd.f32 %v309, %v321
        %v333 = vadd.f32 %v310, %v325
        %v334 = vadd.f32 %v311, %v321
        %v335 = vadd.f32 %v312, %v325
        %v336 = vadd.f32 %v313, %v321
        %v337 = vadd.f32 %v314, %v325
        %v338 = vadd.f32 %v315, %v321
        %v339 = vadd.f32 %v316, %v325
        %340 = vst [vmem:[#allocation2 + $0x10] sm:$0xff] %v272
        %341 = vst [vmem:[#allocation2 + $0x18] sm:$0xff] %v273
        %342 = vst [vmem:[#allocation2 + $0x20] sm:$0xff] %v274
        %343 = vst [vmem:[#allocation2 + $0x28] sm:$0xff] %v275
        %344 = vst [vmem:[#allocation2 + $0x30] sm:$0xff] %v276
        %345 = vst [vmem:[#allocation2 + $0x38] sm:$0xff] %v277
        %346 = vst [vmem:[#allocation2 + $0x40] sm:$0xff] %v278
        %347 = vst [vmem:[#allocation2 + $0x48] sm:$0xff] %v279
        %348 = vst [vmem:[#allocation2 + $0x50] sm:$0xff] %v280
        %349 = vst [vmem:[#allocation2 + $0x58] sm:$0xff] %v281
        %350 = vst [vmem:[#allocation2 + $0x60] sm:$0xff] %v282
        %351 = vst [vmem:[#allocation2 + $0x68] sm:$0xff] %v283
        %v352 = vld [vmem:[#allocation2] sm:$0x80]
        %v353 = vld [vmem:[#allocation2 + $0x8] sm:$0x80]
        %v354 = vld [vmem:[#allocation2 + $0x10] sm:$0xff]
        %v355 = vld [vmem:[#allocation2 + $0x18] sm:$0xff]
        %v356 = vld [vmem:[#allocation2 + $0x20] sm:$0xff]
        %v357 = vld [vmem:[#allocation2 + $0x28] sm:$0xff]
        %v358 = vld [vmem:[#allocation2 + $0x30] sm:$0xff]
        %v359 = vld [vmem:[#allocation2 + $0x38] sm:$0xff]
        %v360 = vld [vmem:[#allocation2 + $0x40] sm:$0xff]
        %v361 = vld [vmem:[#allocation2 + $0x48] sm:$0xff]
        %v362 = vld [vmem:[#allocation2 + $0x50] sm:$0xff]
        %v363 = vld [vmem:[#allocation2 + $0x58] sm:$0xff]
        %v364 = vld [vmem:[#allocation2 + $0x60] sm:$0x7f]
        %v365 = vld [vmem:[#allocation2 + $0x68] sm:$0x7f]
        %v366 = vlaneseq
        %v367 = vshrl.u32 %v366, 7
        %v368 = vsub.s32 2, %v367
        %v369 = vrot.slane %v284, %v368
        %v370 = vlaneseq
        %v371 = vshrl.u32 %v370, 7
        %v372 = vsub.s32 6, %v371
        %v373 = vrot.slane %v284, %v372
        %v376 = vlaneseq
        %v377 = vshrl.u32 %v376, 7
        %v378 = vsub.s32 2, %v377
        %v379 = vrot.slane %v369, %v378
        %v380 = vlaneseq
        %v381 = vshrl.u32 %v380, 7
        %v382 = vsub.s32 2, %v381
        %v383 = vrot.slane %v373, %v382
        %v384 = vmul.f32 %v352, %v379
        %v385 = vmul.f32 %v353, %v383
        %v386 = vmul.f32 %v354, %v379
        %v387 = vmul.f32 %v355, %v383
        %v388 = vmul.f32 %v356, %v379
        %v389 = vmul.f32 %v357, %v383
        %v390 = vmul.f32 %v358, %v379
        %v391 = vmul.f32 %v359, %v383
        %v392 = vmul.f32 %v360, %v379
        %v393 = vmul.f32 %v361, %v383
        %v394 = vmul.f32 %v362, %v379
        %v395 = vmul.f32 %v363, %v383
        %v396 = vmul.f32 %v364, %v379
        %v397 = vmul.f32 %v365, %v383
        %vm412 = vcmask 1040384
        %v413 = vrot.slane %v384, 7
        %v414 = vrot.slane %v386, 7
        %v415 = vsel %vm412, %v413, %v414
        %v416 = vrot.slane %v385, 7
        %v417 = vrot.slane %v387, 7
        %v418 = vsel %vm412, %v416, %v417
        %v419 = vrot.slane %v388, 7
        %v420 = vsel %vm412, %v414, %v419
        %v421 = vrot.slane %v389, 7
        %v422 = vsel %vm412, %v417, %v421
        %v423 = vrot.slane %v390, 7
        %v424 = vsel %vm412, %v419, %v423
        %v425 = vrot.slane %v391, 7
        %v426 = vsel %vm412, %v421, %v425
        %v427 = vrot.slane %v392, 7
        %v428 = vsel %vm412, %v423, %v427
        %v429 = vrot.slane %v393, 7
        %v430 = vsel %vm412, %v425, %v429
        %v431 = vrot.slane %v394, 7
        %v432 = vsel %vm412, %v427, %v431
        %v433 = vrot.slane %v395, 7
        %v434 = vsel %vm412, %v429, %v433
        %v435 = vrot.slane %v396, 7
        %v436 = vsel %vm412, %v431, %v435
        %v437 = vrot.slane %v397, 7
        %v438 = vsel %vm412, %v433, %v437
        %v451 = vadd.f32 %v328, %v415
        %v452 = vadd.f32 %v329, %v418
        %v453 = vadd.f32 %v330, %v420
        %v454 = vadd.f32 %v331, %v422
        %v455 = vadd.f32 %v332, %v424
        %v456 = vadd.f32 %v333, %v426
        %v457 = vadd.f32 %v334, %v428
        %v458 = vadd.f32 %v335, %v430
        %v459 = vadd.f32 %v336, %v432
        %v460 = vadd.f32 %v337, %v434
        %v461 = vadd.f32 %v338, %v436
        %v462 = vadd.f32 %v339, %v438
        %v463 = vld [vmem:[#allocation2] sm:$0xc0]
        %v464 = vld [vmem:[#allocation2 + $0x8] sm:$0xc0]
        %v465 = vld [vmem:[#allocation2 + $0x60] sm:$0x3f]
        %v466 = vld [vmem:[#allocation2 + $0x68] sm:$0x3f]
        %v467 = vlaneseq
        %v468 = vshrl.u32 %v467, 7
        %v469 = vsub.s32 1, %v468
        %v470 = vrot.slane %v284, %v469
        %v471 = vlaneseq
        %v472 = vshrl.u32 %v471, 7
        %v473 = vsub.s32 5, %v472
        %v474 = vrot.slane %v284, %v473
        %v477 = vlaneseq
        %v478 = vshrl.u32 %v477, 7
        %v479 = vsub.s32 1, %v478
        %v480 = vrot.slane %v470, %v479
        %v481 = vlaneseq
        %v482 = vshrl.u32 %v481, 7
        %v483 = vsub.s32 1, %v482
        %v484 = vrot.slane %v474, %v483
        %v485 = vmul.f32 %v463, %v480
        %v486 = vmul.f32 %v464, %v484
        %v487 = vmul.f32 %v354, %v480
        %v488 = vmul.f32 %v355, %v484
        %v489 = vmul.f32 %v356, %v480
        %v490 = vmul.f32 %v357, %v484
        %v491 = vmul.f32 %v358, %v480
        %v492 = vmul.f32 %v359, %v484
        %v493 = vmul.f32 %v360, %v480
        %v494 = vmul.f32 %v361, %v484
        %v495 = vmul.f32 %v362, %v480
        %v496 = vmul.f32 %v363, %v484
        %v497 = vmul.f32 %v465, %v480
        %v498 = vmul.f32 %v466, %v484
        %vm513 = vcmask 1041408
        %v514 = vrot.slane %v485, 6
        %v515 = vrot.slane %v487, 6
        %v516 = vsel %vm513, %v514, %v515
        %v517 = vrot.slane %v486, 6
        %v518 = vrot.slane %v488, 6
        %v519 = vsel %vm513, %v517, %v518
        %v520 = vrot.slane %v489, 6
        %v521 = vsel %vm513, %v515, %v520
        %v522 = vrot.slane %v490, 6
        %v523 = vsel %vm513, %v518, %v522
        %v524 = vrot.slane %v491, 6
        %v525 = vsel %vm513, %v520, %v524
        %v526 = vrot.slane %v492, 6
        %v527 = vsel %vm513, %v522, %v526
        %v528 = vrot.slane %v493, 6
        %v529 = vsel %vm513, %v524, %v528
        %v530 = vrot.slane %v494, 6
        %v531 = vsel %vm513, %v526, %v530
        %v532 = vrot.slane %v495, 6
        %v533 = vsel %vm513, %v528, %v532
        %v534 = vrot.slane %v496, 6
        %v535 = vsel %vm513, %v530, %v534
        %v536 = vrot.slane %v497, 6
        %v537 = vsel %vm513, %v532, %v536
        %v538 = vrot.slane %v498, 6
        %v539 = vsel %vm513, %v534, %v538
        %v552 = vadd.f32 %v451, %v516
        %v553 = vadd.f32 %v452, %v519
        %v554 = vadd.f32 %v453, %v521
        %v555 = vadd.f32 %v454, %v523
        %v556 = vadd.f32 %v455, %v525
        %v557 = vadd.f32 %v456, %v527
        %v558 = vadd.f32 %v457, %v529
        %v559 = vadd.f32 %v458, %v531
        %v560 = vadd.f32 %v459, %v533
        %v561 = vadd.f32 %v460, %v535
        %v562 = vadd.f32 %v461, %v537
        %v563 = vadd.f32 %v462, %v539
        %v564 = vld [vmem:[#allocation2] sm:$0xe0]
        %v565 = vld [vmem:[#allocation2 + $0x8] sm:$0xe0]
        %v566 = vld [vmem:[#allocation2 + $0x60] sm:$0x1f]
        %v567 = vld [vmem:[#allocation2 + $0x68] sm:$0x1f]
        %v568 = vlaneseq
        %v569 = vshrl.u32 %v568, 7
        %v570 = vsub.s32 0, %v569
        %v571 = vrot.slane %v284, %v570
        %v572 = vlaneseq
        %v573 = vshrl.u32 %v572, 7
        %v574 = vsub.s32 4, %v573
        %v575 = vrot.slane %v284, %v574
        %v578 = vlaneseq
        %v579 = vshrl.u32 %v578, 7
        %v580 = vsub.s32 0, %v579
        %v581 = vrot.slane %v571, %v580
        %v582 = vlaneseq
        %v583 = vshrl.u32 %v582, 7
        %v584 = vsub.s32 0, %v583
        %v585 = vrot.slane %v575, %v584
        %v586 = vmul.f32 %v564, %v581
        %v587 = vmul.f32 %v565, %v585
        %v588 = vmul.f32 %v354, %v581
        %v589 = vmul.f32 %v355, %v585
        %v590 = vmul.f32 %v356, %v581
        %v591 = vmul.f32 %v357, %v585
        %v592 = vmul.f32 %v358, %v581
        %v593 = vmul.f32 %v359, %v585
        %v594 = vmul.f32 %v360, %v581
        %v595 = vmul.f32 %v361, %v585
        %v596 = vmul.f32 %v362, %v581
        %v597 = vmul.f32 %v363, %v585
        %v598 = vmul.f32 %v566, %v581
        %v599 = vmul.f32 %v567, %v585
        %vm614 = vcmask 1042432
        %v615 = vrot.slane %v586, 5
        %v616 = vrot.slane %v588, 5
        %v617 = vsel %vm614, %v615, %v616
        %v618 = vrot.slane %v587, 5
        %v619 = vrot.slane %v589, 5
        %v620 = vsel %vm614, %v618, %v619
        %v621 = vrot.slane %v590, 5
        %v622 = vsel %vm614, %v616, %v621
        %v623 = vrot.slane %v591, 5
        %v624 = vsel %vm614, %v619, %v623
        %v625 = vrot.slane %v592, 5
        %v626 = vsel %vm614, %v621, %v625
        %v627 = vrot.slane %v593, 5
        %v628 = vsel %vm614, %v623, %v627
        %v629 = vrot.slane %v594, 5
        %v630 = vsel %vm614, %v625, %v629
        %v631 = vrot.slane %v595, 5
        %v632 = vsel %vm614, %v627, %v631
        %v633 = vrot.slane %v596, 5
        %v634 = vsel %vm614, %v629, %v633
        %v635 = vrot.slane %v597, 5
        %v636 = vsel %vm614, %v631, %v635
        %v637 = vrot.slane %v598, 5
        %v638 = vsel %vm614, %v633, %v637
        %v639 = vrot.slane %v599, 5
        %v640 = vsel %vm614, %v635, %v639
        %v653 = vadd.f32 %v552, %v617
        %v654 = vadd.f32 %v553, %v620
        %v655 = vadd.f32 %v554, %v622
        %v656 = vadd.f32 %v555, %v624
        %v657 = vadd.f32 %v556, %v626
        %v658 = vadd.f32 %v557, %v628
        %v659 = vadd.f32 %v558, %v630
        %v660 = vadd.f32 %v559, %v632
        %v661 = vadd.f32 %v560, %v634
        %v662 = vadd.f32 %v561, %v636
        %v663 = vadd.f32 %v562, %v638
        %v664 = vadd.f32 %v563, %v640
        %665 = vst [vmem:[%s255] sm:$0xff] %v653
        %666 = vst [vmem:[%s255 + $0x8] sm:$0xff] %v654
        %667 = vst [vmem:[%s255 + $0x10] sm:$0xff] %v655
        %668 = vst [vmem:[%s255 + $0x18] sm:$0xff] %v656
        %669 = vst [vmem:[%s255 + $0x20] sm:$0xff] %v657
        %670 = vst [vmem:[%s255 + $0x28] sm:$0xff] %v658
        %671 = vst [vmem:[%s255 + $0x30] sm:$0xff] %v659
        %672 = vst [vmem:[%s255 + $0x38] sm:$0xff] %v660
        %673 = vst [vmem:[%s255 + $0x40] sm:$0xff] %v661
        %674 = vst [vmem:[%s255 + $0x48] sm:$0xff] %v662
        %675 = vst [vmem:[%s255 + $0x50] sm:$0xff] %v663
        %676 = vst [vmem:[%s255 + $0x58] sm:$0xff] %v664
        %s677 = sand.u32 %s134, 1
        %s678 = scalar_lea.sflag [#allocation5], %s677
        %s679 = sand.u32 %s134, 1
        %s680 = smul.addr %s679, 96
        %s681 = scalar_lea.vmem [#allocation8], %s680
        // Predicated region
        $region45: #{tpu_custom_call.1} parent=31 // pred_check
          %p682 = pneg %p144
        $region46: #{tpu_custom_call.1} parent=31 // pred_check_branch
          %684 = sbr.rel (%p682) target = $region48
        $region47: #{tpu_custom_call.1} parent=31 // pred_region
          %s685 = smul.u32 6, %s28
          %s686 = smul.u32 2, %s27
          %s688 = ssub.s32 1536, 1536
          %689 = vsyncadd %s678, %s688
          %s690 = smul.addr %s685, 2
          %s691 = sadd.s32 %s686, %s690
          %s692 = smul.addr %s26, 12
          %s693 = sadd.s32 %s691, %s692
          %s694 = smul.addr %s693, 128
          %s695 = scalar_lea.hbm %s3, %s694
          %s696 = sshll.u32 %s681, 4
          %s697 = int_to_ptr.vmem [resolvable:$true] %s696
          %702 = dma.vmem_to_hbm [thread:$0]  %s697, 1536, %s695, %s678, 256, 256, 16
        $region48: #{tpu_custom_call.1} parent=31 // pred_fallthru
          _
      $region32: #{tpu_custom_call.1} parent=5 // pred_fallthru
        _
      %p703 = scmp.le.s32.totalorder 2, %s16
      // Predicated region
      $region49: #{tpu_custom_call.1} parent=5 // pred_check
        %p704 = pneg %p703
      $region50: #{tpu_custom_call.1} parent=5 // pred_check_branch
        %706 = sbr.rel (%p704) target = $region52
      $region51: #{tpu_custom_call.1} parent=5 // pred_region
        %s707 = ssub.s32 %s16, 2
        // Predicated region
        $region53: #{tpu_custom_call.1} parent=51 // pred_check
          %p708 = pneg %p150
        $region54: #{tpu_custom_call.1} parent=51 // pred_check_branch
          %710 = sbr.rel (%p708) target = $region56
        $region55: #{tpu_custom_call.1} parent=51 // pred_region
          %s711 = sand.u32 %s135, 1
          %s712 = scalar_lea.sflag [#allocation5], %s711
          %s713 = sand.u32 %s135, 1
          %s714 = smul.addr %s713, 96
          %s715 = scalar_lea.vmem [#allocation8], %s714
          %716 = dma.done %s712, 1536
        $region56: #{tpu_custom_call.1} parent=51 // pred_fallthru
          _
      $region52: #{tpu_custom_call.1} parent=5 // pred_fallthru
        _
    $region6: #{tpu_custom_call.1} parent=1 // loop_footer
      %s20 = sadd.s32 1, %s16
    $region7: #{tpu_custom_call.1} parent=1 // loop_footer_branch
      %15 = sbr.rel target = $region3
    $region8: #{tpu_custom_call.1} parent=1 // loop_exit
      _
    %717 = vsyncpa [#allocation4], 1
    %s718 = scalar_lea.sflag [#allocation4], 1
    %719 = vsyncpa %s718, 1
    %720 = vsyncpa [#allocation7], 1
    %721 = vsyncpa [#allocation5], 1
    %s722 = scalar_lea.sflag [#allocation5], 1
    %723 = vsyncpa %s722, 1

</llo_original>
